<compile_context>
chip_gen: v7x
topology: tpu7x:2x2x1
jax: 0.10.0
libtpu: 0.0.40
codegen_flags: <defaults>
</compile_context>

<pallas_src>
import math

import jax
import jax.numpy as jnp
from jax import lax
from jax.experimental import pallas as pl
from jax.experimental.pallas import tpu as pltpu

HEAP_MAX = 5
HEAPS = 4
HIDDEN = 200                   # multiple of 8 -> clean sublane tiling, no pad
OUT = HEAPS * HEAP_MAX         # 20
LANE = 128                     # TPU lane width
CHUNK = 128                    # lanes per fused layer1->layer2 chunk (~25 vregs of h)


def _round_up(n, m):
    return ((n + m - 1) // m) * m


def _cdiv(a, b):
    return (a + b - 1) // b


def dqn_kernel(x_ref, w1_ref, b1_ref, w2_ref, b2_ref, o_ref):
    # x_ref : (HEAPS, TB)   features on sublanes, batch on lanes
    # w1_ref: (HIDDEN, HEAPS)  f32
    # b1_ref: (HIDDEN, 1)      f32
    # w2_ref: (OUT, HIDDEN)    f32 or bf16 (MXU operand dtype)
    # b2_ref: (OUT, 1)         f32
    # o_ref : (OUT, TB)        f32
    w1 = w1_ref[...]
    b1 = b1_ref[...]
    w2 = w2_ref[...]
    b2 = b2_ref[...]

    tb = x_ref.shape[-1]
    n_chunks = tb // CHUNK     # static (tb is a compile-time multiple of CHUNK)

    def chunk(off):
        xc = x_ref[:, pl.ds(off, CHUNK)]                       # (HEAPS, CHUNK)
        # Layer 1 on the VPU: the K=4 contraction as 4 outer-product FMAs
        # producing a (HIDDEN, CHUNK) activation that stays in vregs.
        h = b1 + w1[:, 0:1] * xc[0:1, :]
        for k in range(1, HEAPS):                              # static unroll
            h = h + w1[:, k:k + 1] * xc[k:k + 1, :]
        h = jnp.maximum(h, 0.0)                                # (HIDDEN, CHUNK)
        # Layer 2 on the MXU; h is consumed directly (no VMEM round-trip).
        y = jnp.dot(w2, h.astype(w2.dtype),
                    preferred_element_type=jnp.float32)        # (OUT, CHUNK)
        o_ref[:, pl.ds(off, CHUNK)] = jnp.maximum(y + b2, 0.0)

    if n_chunks == 1:
        chunk(0)
    else:
        def body(c, carry):
            chunk(pl.multiple_of(c * CHUNK, CHUNK))
            return carry
        lax.fori_loop(0, n_chunks, body, 0,
                      unroll=math.gcd(n_chunks, 8))


def dqn_forward(x_flat, w1, b1, w2, b2, *, tb=8192,
                mxu_dtype=jnp.float32, transpose_output=True):
    """Forward pass matching the PyTorch DQN module.

    x_flat: 1-D float array of length B*HEAPS (same flat input the torch module gets).
    w1: (HIDDEN, HEAPS), b1: (HIDDEN,), w2: (OUT, HIDDEN), b2: (OUT,)  (torch layouts).
    tb: maximum batch-tile width (lanes) per grid step.
    mxu_dtype: dtype for the layer-2 MXU operands (bf16 = v6e/v7x fast path).
    transpose_output: if False, return (OUT, B) and skip the wrapper transpose.
    """
    n = x_flat.shape[0]
    assert n % HEAPS == 0
    batch = n // HEAPS

    # Batch padding: only to a multiple of 128; tile width derived from
    # ceil-div so padding waste per tile is < 128 columns.  Use >=2 tiles
    # whenever possible so a v7x chip can shard the "parallel" axis across
    # both TensorCores (one extra grid step is negligible on v5e/v6e).
    b128 = _round_up(batch, LANE)
    n_tiles = max(1, _cdiv(b128, tb))
    if n_tiles == 1 and b128 >= 2 * LANE:
        n_tiles = 2
    tile = _round_up(_cdiv(b128, n_tiles), LANE)
    b_pad = tile * n_tiles

    # Transposed, lane-dense layout: (HEAPS, batch) in, (OUT, batch) out, so
    # the long batch axis sits on the 128-lane dim for input DMA and output
    # stores (no masked vst on the batch axis).
    x_t = x_flat.astype(jnp.float32).reshape(batch, HEAPS).T      # (HEAPS, batch)
    x_t = jnp.pad(x_t, ((0, 0), (0, b_pad - batch)))              # (HEAPS, b_pad)

    w1_p = w1.astype(jnp.float32)                                 # (200, 4)
    b1_p = b1.astype(jnp.float32).reshape(HIDDEN, 1)              # (200, 1)
    w2_p = w2.astype(mxu_dtype)                                   # (20, 200)
    b2_p = b2.astype(jnp.float32).reshape(OUT, 1)                 # (20, 1)

    flops = 2 * b_pad * (HEAPS * HIDDEN + HIDDEN * OUT)
    bytes_accessed = (4 * x_t.size + 4 * OUT * b_pad
                      + 4 * (w1_p.size + b1_p.size + b2_p.size)
                      + w2_p.size * jnp.dtype(mxu_dtype).itemsize)

    out_t = pl.pallas_call(
        dqn_kernel,
        out_shape=jax.ShapeDtypeStruct((OUT, b_pad), jnp.float32),
        grid=(n_tiles,),
        in_specs=[
            pl.BlockSpec((HEAPS, tile), lambda i: (0, i)),        # x tile, pipelined
            pl.BlockSpec((HIDDEN, HEAPS), lambda i: (0, 0)),      # weights stay resident
            pl.BlockSpec((HIDDEN, 1), lambda i: (0, 0)),
            pl.BlockSpec((OUT, HIDDEN), lambda i: (0, 0)),
            pl.BlockSpec((OUT, 1), lambda i: (0, 0)),
        ],
        out_specs=pl.BlockSpec((OUT, tile), lambda i: (0, i)),
        compiler_params=pltpu.CompilerParams(
            dimension_semantics=("parallel",)),                   # batch tiles independent
        cost_estimate=pl.CostEstimate(
            flops=flops, transcendentals=0, bytes_accessed=bytes_accessed),
    )(x_t, w1_p, b1_p, w2_p, b2_p)

    out_t = out_t[:, :batch]                                      # drop padded columns
    # (OUT, B) is the lane-dense layout the kernel wrote; transpose only if the
    # caller needs the torch (B, OUT) layout.
    return out_t.T if transpose_output else out_t


def init_params(key):
    """Deterministic init mimicking nn.Linear default: U(-1/sqrt(fan_in), +1/sqrt(fan_in))."""
    k1, k2, k3, k4 = jax.random.split(key, 4)
    bound1 = 1.0 / jnp.sqrt(jnp.float32(HEAPS))
    bound2 = 1.0 / jnp.sqrt(jnp.float32(HIDDEN))
    w1 = jax.random.uniform(k1, (HIDDEN, HEAPS), jnp.float32, -bound1, bound1)
    b1 = jax.random.uniform(k2, (HIDDEN,), jnp.float32, -bound1, bound1)
    w2 = jax.random.uniform(k3, (OUT, HIDDEN), jnp.float32, -bound2, bound2)
    b2 = jax.random.uniform(k4, (OUT,), jnp.float32, -bound2, bound2)
    return w1, b1, w2, b2


def _reference(x_flat, w1, b1, w2, b2):
    batch = x_flat.shape[0] // HEAPS
    x2d = x_flat.reshape(batch, HEAPS)
    h = jnp.maximum(x2d @ w1.T + b1, 0.0)
    return jnp.maximum(h @ w2.T + b2, 0.0)


if __name__ == "__main__":
    key = jax.random.PRNGKey(0)
    kp, kx = jax.random.split(key)
    w1, b1, w2, b2 = init_params(kp)

    # Small Nim batch: heap states are small non-negative ints, cast to float32.
    batch = 8
    x_flat = jax.random.randint(kx, (batch * HEAPS,), 0, HEAP_MAX + 1).astype(jnp.float32)

    # Default (f32 MXU) path — bit-faithful to the torch forward.
    out = jax.block_until_ready(dqn_forward(x_flat, w1, b1, w2, b2))
    ref = _reference(x_flat, w1, b1, w2, b2)
    assert out.shape == (batch, OUT)
    assert jnp.allclose(out, ref, atol=1e-5, rtol=1e-5)

    # Multi-tile / multi-chunk path (exercises the fori_loop fusion, the >=2-tile
    # grid and the 128-padding / slice-off of a ragged batch).
    batch2 = 300
    x_flat2 = jax.random.randint(jax.random.fold_in(kx, 1),
                                 (batch2 * HEAPS,), 0, HEAP_MAX + 1).astype(jnp.float32)
    out2 = jax.block_until_ready(dqn_forward(x_flat2, w1, b1, w2, b2, tb=256))
    ref2 = _reference(x_flat2, w1, b1, w2, b2)
    assert out2.shape == (batch2, OUT)
    assert jnp.allclose(out2, ref2, atol=1e-5, rtol=1e-5)

    # bf16 MXU-operand fast path (v6e/v7x review item) — looser tolerance.
    out_bf16 = jax.block_until_ready(
        dqn_forward(x_flat, w1, b1, w2, b2, mxu_dtype=jnp.bfloat16))
    assert jnp.allclose(out_bf16, ref, atol=1e-1, rtol=1e-1)

    print("KERNEL_OK")
</pallas_src>

<mosaic_0001>
module attributes {stable_mosaic.version = 11 : i64} {
  func.func @dqn_kernel(%arg0: i32, %arg1: memref<4x128xf32, #tpu.memory_space<vmem>>, %arg2: memref<200x4xf32, #tpu.memory_space<vmem>>, %arg3: memref<200x1xf32, #tpu.memory_space<vmem>>, %arg4: memref<20x200xf32, #tpu.memory_space<vmem>>, %arg5: memref<20x1xf32, #tpu.memory_space<vmem>>, %arg6: memref<20x128xf32, #tpu.memory_space<vmem>>) attributes {dimension_semantics = [#tpu.dimension_semantics<parallel>], iteration_bounds = array<i64: 1>, scalar_prefetch = 0 : i64, scratch_operands = 0 : i64, tpu.core_type = #tpu.core_type<tc>, window_params = [{transform_indices = @transform_0, window_bounds = array<i64: 4, 128>}, {pipeline_mode = #tpu.pipeline_mode<synchronous>, transform_indices = @transform_1, window_bounds = array<i64: 200, 4>}, {pipeline_mode = #tpu.pipeline_mode<synchronous>, transform_indices = @transform_2, window_bounds = array<i64: 200, 1>}, {pipeline_mode = #tpu.pipeline_mode<synchronous>, transform_indices = @transform_3, window_bounds = array<i64: 20, 200>}, {pipeline_mode = #tpu.pipeline_mode<synchronous>, transform_indices = @transform_4, window_bounds = array<i64: 20, 1>}, {transform_indices = @transform_5, window_bounds = array<i64: 20, 128>}]} {
    %c0 = arith.constant 0 : index
    %c0_0 = arith.constant 0 : index
    %0 = vector.load %arg2[%c0, %c0_0] : memref<200x4xf32, #tpu.memory_space<vmem>>, vector<200x4xf32>
    %c0_1 = arith.constant 0 : index
    %c0_2 = arith.constant 0 : index
    %1 = vector.load %arg3[%c0_1, %c0_2] : memref<200x1xf32, #tpu.memory_space<vmem>>, vector<200x1xf32>
    %c0_3 = arith.constant 0 : index
    %c0_4 = arith.constant 0 : index
    %2 = vector.load %arg4[%c0_3, %c0_4] : memref<20x200xf32, #tpu.memory_space<vmem>>, vector<20x200xf32>
    %c0_5 = arith.constant 0 : index
    %c0_6 = arith.constant 0 : index
    %3 = vector.load %arg5[%c0_5, %c0_6] : memref<20x1xf32, #tpu.memory_space<vmem>>, vector<20x1xf32>
    %c0_7 = arith.constant 0 : index
    %c0_8 = arith.constant 0 : index
    %4 = vector.load %arg1[%c0_7, %c0_8] : memref<4x128xf32, #tpu.memory_space<vmem>>, vector<4x128xf32>
    %5 = vector.extract_strided_slice %0 {offsets = [0, 0], sizes = [200, 1], strides = [1, 1]} : vector<200x4xf32> to vector<200x1xf32>
    %6 = vector.extract_strided_slice %4 {offsets = [0, 0], sizes = [1, 128], strides = [1, 1]} : vector<4x128xf32> to vector<1x128xf32>
    %7 = vector.broadcast %5 : vector<200x1xf32> to vector<200x128xf32>
    %8 = vector.broadcast %6 : vector<1x128xf32> to vector<200x128xf32>
    %9 = arith.mulf %7, %8 : vector<200x128xf32>
    %10 = vector.broadcast %1 : vector<200x1xf32> to vector<200x128xf32>
    %11 = arith.addf %10, %9 : vector<200x128xf32>
    %12 = vector.extract_strided_slice %0 {offsets = [0, 1], sizes = [200, 1], strides = [1, 1]} : vector<200x4xf32> to vector<200x1xf32>
    %13 = vector.extract_strided_slice %4 {offsets = [1, 0], sizes = [1, 128], strides = [1, 1]} : vector<4x128xf32> to vector<1x128xf32>
    %14 = vector.broadcast %12 : vector<200x1xf32> to vector<200x128xf32>
    %15 = vector.broadcast %13 : vector<1x128xf32> to vector<200x128xf32>
    %16 = arith.mulf %14, %15 : vector<200x128xf32>
    %17 = arith.addf %11, %16 : vector<200x128xf32>
    %18 = vector.extract_strided_slice %0 {offsets = [0, 2], sizes = [200, 1], strides = [1, 1]} : vector<200x4xf32> to vector<200x1xf32>
    %19 = vector.extract_strided_slice %4 {offsets = [2, 0], sizes = [1, 128], strides = [1, 1]} : vector<4x128xf32> to vector<1x128xf32>
    %20 = vector.broadcast %18 : vector<200x1xf32> to vector<200x128xf32>
    %21 = vector.broadcast %19 : vector<1x128xf32> to vector<200x128xf32>
    %22 = arith.mulf %20, %21 : vector<200x128xf32>
    %23 = arith.addf %17, %22 : vector<200x128xf32>
    %24 = vector.extract_strided_slice %0 {offsets = [0, 3], sizes = [200, 1], strides = [1, 1]} : vector<200x4xf32> to vector<200x1xf32>
    %25 = vector.extract_strided_slice %4 {offsets = [3, 0], sizes = [1, 128], strides = [1, 1]} : vector<4x128xf32> to vector<1x128xf32>
    %26 = vector.broadcast %24 : vector<200x1xf32> to vector<200x128xf32>
    %27 = vector.broadcast %25 : vector<1x128xf32> to vector<200x128xf32>
    %28 = arith.mulf %26, %27 : vector<200x128xf32>
    %29 = arith.addf %23, %28 : vector<200x128xf32>
    %cst = arith.constant 0.000000e+00 : f32
    %30 = vector.broadcast %cst : f32 to vector<200x128xf32>
    %31 = arith.maximumf %29, %30 : vector<200x128xf32>
    %cst_9 = arith.constant dense<0.000000e+00> : vector<20x128xf32>
    %32 = tpu.matmul %2, %31, %cst_9 {dimension_numbers = #tpu.dot_dimension_numbers<[1], [0], [0], [1], [0, 0, 1, 1], [], []>} : vector<20x200xf32>, vector<200x128xf32>, vector<20x128xf32> -> vector<20x128xf32>
    %33 = vector.broadcast %3 : vector<20x1xf32> to vector<20x128xf32>
    %34 = arith.addf %32, %33 : vector<20x128xf32>
    %cst_10 = arith.constant 0.000000e+00 : f32
    %35 = vector.broadcast %cst_10 : f32 to vector<20x128xf32>
    %36 = arith.maximumf %34, %35 : vector<20x128xf32>
    %c0_11 = arith.constant 0 : index
    %c0_12 = arith.constant 0 : index
    %37 = vector.load %arg6[%c0_11, %c0_12] : memref<20x128xf32, #tpu.memory_space<vmem>>, vector<20x128xf32>
    tpu.vector_store %arg6[%c0_11, %c0_12], %36 {strides = array<i32>} : memref<20x128xf32, #tpu.memory_space<vmem>>, vector<20x128xf32>,
    return
  }
  func.func @transform_0(%arg0: i32) -> (i32, i32) {
    %c0_i32 = arith.constant 0 : i32
    %c0_i32_0 = arith.constant 0 : i32
    return %c0_i32, %arg0 : i32, i32
  }
  func.func @transform_1(%arg0: i32) -> (i32, i32) {
    %c0_i32 = arith.constant 0 : i32
    %c0_i32_0 = arith.constant 0 : i32
    %c0_i32_1 = arith.constant 0 : i32
    return %c0_i32, %c0_i32_0 : i32, i32
  }
  func.func @transform_2(%arg0: i32) -> (i32, i32) {
    %c0_i32 = arith.constant 0 : i32
    %c0_i32_0 = arith.constant 0 : i32
    %c0_i32_1 = arith.constant 0 : i32
    return %c0_i32, %c0_i32_0 : i32, i32
  }
  func.func @transform_3(%arg0: i32) -> (i32, i32) {
    %c0_i32 = arith.constant 0 : i32
    %c0_i32_0 = arith.constant 0 : i32
    %c0_i32_1 = arith.constant 0 : i32
    return %c0_i32, %c0_i32_0 : i32, i32
  }
  func.func @transform_4(%arg0: i32) -> (i32, i32) {
    %c0_i32 = arith.constant 0 : i32
    %c0_i32_0 = arith.constant 0 : i32
    %c0_i32_1 = arith.constant 0 : i32
    return %c0_i32, %c0_i32_0 : i32, i32
  }
  func.func @transform_5(%arg0: i32) -> (i32, i32) {
    %c0_i32 = arith.constant 0 : i32
    %c0_i32_0 = arith.constant 0 : i32
    return %c0_i32, %arg0 : i32, i32
  }
}

</mosaic_0001>

<llo_original>
// kernel: tpu_custom_call.1
$region0: #{tpu_custom_call.1}
  #allocation0 [shape = 'u32[]', space=smem, size = 0x4, offset = 0x4, fixed_abs, tag = 'smem constant byte address 0x4 - core index']
  #allocation1 [shape = 'u32[144,128]{1,0:T(1,128)}', space=vmem, size = 0x12000, scoped, tag = 'internal scratch']
  %s0 = inlined_call_operand.vmem [shape: f32[4,128], index: 0, kind: input, shape index: {}]
  %s1 = inlined_call_operand.vmem [shape: f32[200,4], index: 1, kind: input, shape index: {}]
  %s2 = inlined_call_operand.vmem [shape: f32[200,1], index: 2, kind: input, shape index: {}]
  %s3 = inlined_call_operand.vmem [shape: f32[20,200], index: 3, kind: input, shape index: {}]
  %s4 = inlined_call_operand.vmem [shape: f32[20,1], index: 4, kind: input, shape index: {}]
  %s5 = inlined_call_operand.hbm [shape: f32[20,128], index: 5, kind: output, shape index: {}]
  %s6 = sld [smem:[#allocation0]]
  $region30: #{tpu_custom_call.1} parent=0
    _
  %s8 = ssub.s32 1, %s6
  %s9 = scalar_select 0, %s8, %s6
  $region1: #{tpu_custom_call.1} parent=0
    #allocation2 [shape = 'u8[12288]{0}', space=vmem, size = 0x3000, scoped, tag = 'output window, operand 0, single buffered']
    #allocation3 [shape = 's32[1]{0}', space=sflag, size = 0x4, scoped, tag = 'scoped memory for tpu_custom_call.1']
    %10 = vsyncpa [#allocation3], 0
    // Predicated region
    $region2: #{tpu_custom_call.1} parent=1 // pred_check
      _
    $region3: #{tpu_custom_call.1} parent=1 // pred_check_branch
      %12 = sbr.rel (0) target = $region5
    $region4: #{tpu_custom_call.1} parent=1 // pred_region
      _
    $region5: #{tpu_custom_call.1} parent=1 // pred_fallthru
      _
    // Predicated region
    $region6: #{tpu_custom_call.1} parent=1 // pred_check
      _
    $region7: #{tpu_custom_call.1} parent=1 // pred_check_branch
      %14 = sbr.rel (0) target = $region9
    $region8: #{tpu_custom_call.1} parent=1 // pred_region
      _
    $region9: #{tpu_custom_call.1} parent=1 // pred_fallthru
      _
    // Predicated region
    $region10: #{tpu_custom_call.1} parent=1 // pred_check
      _
    $region11: #{tpu_custom_call.1} parent=1 // pred_check_branch
      %16 = sbr.rel (0) target = $region13
    $region12: #{tpu_custom_call.1} parent=1 // pred_region
      _
    $region13: #{tpu_custom_call.1} parent=1 // pred_fallthru
      _
    // Predicated region
    $region14: #{tpu_custom_call.1} parent=1 // pred_check
      _
    $region15: #{tpu_custom_call.1} parent=1 // pred_check_branch
      %18 = sbr.rel (0) target = $region17
    $region16: #{tpu_custom_call.1} parent=1 // pred_region
      _
    $region17: #{tpu_custom_call.1} parent=1 // pred_fallthru
      _
    // Predicated region
    $region18: #{tpu_custom_call.1} parent=1 // pred_check
      _
    $region19: #{tpu_custom_call.1} parent=1 // pred_check_branch
      %20 = sbr.rel (0) target = $region21
    $region20: #{tpu_custom_call.1} parent=1 // pred_region
      _
    $region21: #{tpu_custom_call.1} parent=1 // pred_fallthru
      _
    %v21 = vld [vmem:[%s1] sm:$0xff]
    %v22 = vld [vmem:[%s1 + $0x8] sm:$0xff]
    %v23 = vld [vmem:[%s1 + $0x10] sm:$0xff]
    %v24 = vld [vmem:[%s1 + $0x18] sm:$0xff]
    %v25 = vld [vmem:[%s1 + $0x20] sm:$0xff]
    %v26 = vld [vmem:[%s1 + $0x28] sm:$0xff]
    %v27 = vld [vmem:[%s1 + $0x30] sm:$0xff]
    %v28 = vld [vmem:[%s1 + $0x38] sm:$0xff]
    %v29 = vld [vmem:[%s1 + $0x40] sm:$0xff]
    %v30 = vld [vmem:[%s1 + $0x48] sm:$0xff]
    %v31 = vld [vmem:[%s1 + $0x50] sm:$0xff]
    %v32 = vld [vmem:[%s1 + $0x58] sm:$0xff]
    %v33 = vld [vmem:[%s1 + $0x60] sm:$0xff]
    %v34 = vld [vmem:[%s1 + $0x68] sm:$0xff]
    %v35 = vld [vmem:[%s1 + $0x70] sm:$0xff]
    %v36 = vld [vmem:[%s1 + $0x78] sm:$0xff]
    %v37 = vld [vmem:[%s1 + $0x80] sm:$0xff]
    %v38 = vld [vmem:[%s1 + $0x88] sm:$0xff]
    %v39 = vld [vmem:[%s1 + $0x90] sm:$0xff]
    %v40 = vld [vmem:[%s1 + $0x98] sm:$0xff]
    %v41 = vld [vmem:[%s1 + $0xa0] sm:$0xff]
    %v42 = vld [vmem:[%s1 + $0xa8] sm:$0xff]
    %v43 = vld [vmem:[%s1 + $0xb0] sm:$0xff]
    %v44 = vld [vmem:[%s1 + $0xb8] sm:$0xff]
    %v45 = vld [vmem:[%s1 + $0xc0] sm:$0xff]
    %v46 = vld [vmem:[%s2] sm:$0xff]
    %v47 = vld [vmem:[%s2 + $0x8] sm:$0xff]
    %v48 = vld [vmem:[%s2 + $0x10] sm:$0xff]
    %v49 = vld [vmem:[%s2 + $0x18] sm:$0xff]
    %v50 = vld [vmem:[%s2 + $0x20] sm:$0xff]
    %v51 = vld [vmem:[%s2 + $0x28] sm:$0xff]
    %v52 = vld [vmem:[%s2 + $0x30] sm:$0xff]
    %v53 = vld [vmem:[%s2 + $0x38] sm:$0xff]
    %v54 = vld [vmem:[%s2 + $0x40] sm:$0xff]
    %v55 = vld [vmem:[%s2 + $0x48] sm:$0xff]
    %v56 = vld [vmem:[%s2 + $0x50] sm:$0xff]
    %v57 = vld [vmem:[%s2 + $0x58] sm:$0xff]
    %v58 = vld [vmem:[%s2 + $0x60] sm:$0xff]
    %v59 = vld [vmem:[%s2 + $0x68] sm:$0xff]
    %v60 = vld [vmem:[%s2 + $0x70] sm:$0xff]
    %v61 = vld [vmem:[%s2 + $0x78] sm:$0xff]
    %v62 = vld [vmem:[%s2 + $0x80] sm:$0xff]
    %v63 = vld [vmem:[%s2 + $0x88] sm:$0xff]
    %v64 = vld [vmem:[%s2 + $0x90] sm:$0xff]
    %v65 = vld [vmem:[%s2 + $0x98] sm:$0xff]
    %v66 = vld [vmem:[%s2 + $0xa0] sm:$0xff]
    %v67 = vld [vmem:[%s2 + $0xa8] sm:$0xff]
    %v68 = vld [vmem:[%s2 + $0xb0] sm:$0xff]
    %v69 = vld [vmem:[%s2 + $0xb8] sm:$0xff]
    %v70 = vld [vmem:[%s2 + $0xc0] sm:$0xff]
    %v71 = vld [vmem:[%s3] sm:$0xff]
    %v72 = vld [vmem:[%s3 + $0x8] sm:$0xff]
    %v73 = vld [vmem:[%s3 + $0x10] sm:$0xff]
    %v74 = vld [vmem:[%s3 + $0x18] sm:$0xff]
    %v75 = vld [vmem:[%s3 + $0x20] sm:$0xf]
    %v76 = vld [vmem:[%s3 + $0x28] sm:$0xf]
    %v77 = vld [vmem:[%s4] sm:$0xff]
    %v78 = vld [vmem:[%s4 + $0x8] sm:$0xff]
    %v79 = vld [vmem:[%s4 + $0x10] sm:$0xf]
    %v80 = vld [vmem:[%s0] sm:$0xf]
    %82 = vset.pattern.permute.xlu0 0
    %83 = vperm.xlu0 %82, %v21
    %v84 = vpop.permute.xlu0 %83
    %87 = vset.pattern.permute.xlu0 0
    %88 = vperm.xlu0 %87, %v22
    %v89 = vpop.permute.xlu0 %88
    %92 = vset.pattern.permute.xlu0 0
    %93 = vperm.xlu0 %92, %v23
    %v94 = vpop.permute.xlu0 %93
    %97 = vset.pattern.permute.xlu0 0
    %98 = vperm.xlu0 %97, %v24
    %v99 = vpop.permute.xlu0 %98
    %102 = vset.pattern.permute.xlu0 0
    %103 = vperm.xlu0 %102, %v25
    %v104 = vpop.permute.xlu0 %103
    %107 = vset.pattern.permute.xlu0 0
    %108 = vperm.xlu0 %107, %v26
    %v109 = vpop.permute.xlu0 %108
    %112 = vset.pattern.permute.xlu0 0
    %113 = vperm.xlu0 %112, %v27
    %v114 = vpop.permute.xlu0 %113
    %117 = vset.pattern.permute.xlu0 0
    %118 = vperm.xlu0 %117, %v28
    %v119 = vpop.permute.xlu0 %118
    %122 = vset.pattern.permute.xlu0 0
    %123 = vperm.xlu0 %122, %v29
    %v124 = vpop.permute.xlu0 %123
    %127 = vset.pattern.permute.xlu0 0
    %128 = vperm.xlu0 %127, %v30
    %v129 = vpop.permute.xlu0 %128
    %132 = vset.pattern.permute.xlu0 0
    %133 = vperm.xlu0 %132, %v31
    %v134 = vpop.permute.xlu0 %133
    %137 = vset.pattern.permute.xlu0 0
    %138 = vperm.xlu0 %137, %v32
    %v139 = vpop.permute.xlu0 %138
    %142 = vset.pattern.permute.xlu0 0
    %143 = vperm.xlu0 %142, %v33
    %v144 = vpop.permute.xlu0 %143
    %147 = vset.pattern.permute.xlu0 0
    %148 = vperm.xlu0 %147, %v34
    %v149 = vpop.permute.xlu0 %148
    %152 = vset.pattern.permute.xlu0 0
    %153 = vperm.xlu0 %152, %v35
    %v154 = vpop.permute.xlu0 %153
    %157 = vset.pattern.permute.xlu0 0
    %158 = vperm.xlu0 %157, %v36
    %v159 = vpop.permute.xlu0 %158
    %162 = vset.pattern.permute.xlu0 0
    %163 = vperm.xlu0 %162, %v37
    %v164 = vpop.permute.xlu0 %163
    %167 = vset.pattern.permute.xlu0 0
    %168 = vperm.xlu0 %167, %v38
    %v169 = vpop.permute.xlu0 %168
    %172 = vset.pattern.permute.xlu0 0
    %173 = vperm.xlu0 %172, %v39
    %v174 = vpop.permute.xlu0 %173
    %177 = vset.pattern.permute.xlu0 0
    %178 = vperm.xlu0 %177, %v40
    %v179 = vpop.permute.xlu0 %178
    %182 = vset.pattern.permute.xlu0 0
    %183 = vperm.xlu0 %182, %v41
    %v184 = vpop.permute.xlu0 %183
    %187 = vset.pattern.permute.xlu0 0
    %188 = vperm.xlu0 %187, %v42
    %v189 = vpop.permute.xlu0 %188
    %192 = vset.pattern.permute.xlu0 0
    %193 = vperm.xlu0 %192, %v43
    %v194 = vpop.permute.xlu0 %193
    %197 = vset.pattern.permute.xlu0 0
    %198 = vperm.xlu0 %197, %v44
    %v199 = vpop.permute.xlu0 %198
    %202 = vset.pattern.permute.xlu0 0
    %203 = vperm.xlu0 %202, %v45
    %v204 = vpop.permute.xlu0 %203
    %v206 = vlaneseq
    %v207 = vshrl.u32 %v206, 7
    %v208 = vsub.s32 0, %v207
    %v209 = vrot.slane %v80, %v208
    %v210 = vmul.f32 %v84, %v209
    %v211 = vmul.f32 %v89, %v209
    %v212 = vmul.f32 %v94, %v209
    %v213 = vmul.f32 %v99, %v209
    %v214 = vmul.f32 %v104, %v209
    %v215 = vmul.f32 %v109, %v209
    %v216 = vmul.f32 %v114, %v209
    %v217 = vmul.f32 %v119, %v209
    %v218 = vmul.f32 %v124, %v209
    %v219 = vmul.f32 %v129, %v209
    %v220 = vmul.f32 %v134, %v209
    %v221 = vmul.f32 %v139, %v209
    %v222 = vmul.f32 %v144, %v209
    %v223 = vmul.f32 %v149, %v209
    %v224 = vmul.f32 %v154, %v209
    %v225 = vmul.f32 %v159, %v209
    %v226 = vmul.f32 %v164, %v209
    %v227 = vmul.f32 %v169, %v209
    %v228 = vmul.f32 %v174, %v209
    %v229 = vmul.f32 %v179, %v209
    %v230 = vmul.f32 %v184, %v209
    %v231 = vmul.f32 %v189, %v209
    %v232 = vmul.f32 %v194, %v209
    %v233 = vmul.f32 %v199, %v209
    %v234 = vmul.f32 %v204, %v209
    %236 = vset.pattern.permute.xlu0 0
    %237 = vperm.xlu0 %236, %v46
    %v238 = vpop.permute.xlu0 %237
    %241 = vset.pattern.permute.xlu0 0
    %242 = vperm.xlu0 %241, %v47
    %v243 = vpop.permute.xlu0 %242
    %246 = vset.pattern.permute.xlu0 0
    %247 = vperm.xlu0 %246, %v48
    %v248 = vpop.permute.xlu0 %247
    %251 = vset.pattern.permute.xlu0 0
    %252 = vperm.xlu0 %251, %v49
    %v253 = vpop.permute.xlu0 %252
    %256 = vset.pattern.permute.xlu0 0
    %257 = vperm.xlu0 %256, %v50
    %v258 = vpop.permute.xlu0 %257
    %261 = vset.pattern.permute.xlu0 0
    %262 = vperm.xlu0 %261, %v51
    %v263 = vpop.permute.xlu0 %262
    %266 = vset.pattern.permute.xlu0 0
    %267 = vperm.xlu0 %266, %v52
    %v268 = vpop.permute.xlu0 %267
    %271 = vset.pattern.permute.xlu0 0
    %272 = vperm.xlu0 %271, %v53
    %v273 = vpop.permute.xlu0 %272
    %276 = vset.pattern.permute.xlu0 0
    %277 = vperm.xlu0 %276, %v54
    %v278 = vpop.permute.xlu0 %277
    %281 = vset.pattern.permute.xlu0 0
    %282 = vperm.xlu0 %281, %v55
    %v283 = vpop.permute.xlu0 %282
    %286 = vset.pattern.permute.xlu0 0
    %287 = vperm.xlu0 %286, %v56
    %v288 = vpop.permute.xlu0 %287
    %291 = vset.pattern.permute.xlu0 0
    %292 = vperm.xlu0 %291, %v57
    %v293 = vpop.permute.xlu0 %292
    %296 = vset.pattern.permute.xlu0 0
    %297 = vperm.xlu0 %296, %v58
    %v298 = vpop.permute.xlu0 %297
    %301 = vset.pattern.permute.xlu0 0
    %302 = vperm.xlu0 %301, %v59
    %v303 = vpop.permute.xlu0 %302
    %306 = vset.pattern.permute.xlu0 0
    %307 = vperm.xlu0 %306, %v60
    %v308 = vpop.permute.xlu0 %307
    %311 = vset.pattern.permute.xlu0 0
    %312 = vperm.xlu0 %311, %v61
    %v313 = vpop.permute.xlu0 %312
    %316 = vset.pattern.permute.xlu0 0
    %317 = vperm.xlu0 %316, %v62
    %v318 = vpop.permute.xlu0 %317
    %321 = vset.pattern.permute.xlu0 0
    %322 = vperm.xlu0 %321, %v63
    %v323 = vpop.permute.xlu0 %322
    %326 = vset.pattern.permute.xlu0 0
    %327 = vperm.xlu0 %326, %v64
    %v328 = vpop.permute.xlu0 %327
    %331 = vset.pattern.permute.xlu0 0
    %332 = vperm.xlu0 %331, %v65
    %v333 = vpop.permute.xlu0 %332
    %336 = vset.pattern.permute.xlu0 0
    %337 = vperm.xlu0 %336, %v66
    %v338 = vpop.permute.xlu0 %337
    %341 = vset.pattern.permute.xlu0 0
    %342 = vperm.xlu0 %341, %v67
    %v343 = vpop.permute.xlu0 %342
    %346 = vset.pattern.permute.xlu0 0
    %347 = vperm.xlu0 %346, %v68
    %v348 = vpop.permute.xlu0 %347
    %351 = vset.pattern.permute.xlu0 0
    %352 = vperm.xlu0 %351, %v69
    %v353 = vpop.permute.xlu0 %352
    %356 = vset.pattern.permute.xlu0 0
    %357 = vperm.xlu0 %356, %v70
    %v358 = vpop.permute.xlu0 %357
    %v360 = vadd.f32 %v238, %v210
    %v361 = vadd.f32 %v243, %v211
    %v362 = vadd.f32 %v248, %v212
    %v363 = vadd.f32 %v253, %v213
    %v364 = vadd.f32 %v258, %v214
    %v365 = vadd.f32 %v263, %v215
    %v366 = vadd.f32 %v268, %v216
    %v367 = vadd.f32 %v273, %v217
    %v368 = vadd.f32 %v278, %v218
    %v369 = vadd.f32 %v283, %v219
    %v370 = vadd.f32 %v288, %v220
    %v371 = vadd.f32 %v293, %v221
    %v372 = vadd.f32 %v298, %v222
    %v373 = vadd.f32 %v303, %v223
    %v374 = vadd.f32 %v308, %v224
    %v375 = vadd.f32 %v313, %v225
    %v376 = vadd.f32 %v318, %v226
    %v377 = vadd.f32 %v323, %v227
    %v378 = vadd.f32 %v328, %v228
    %v379 = vadd.f32 %v333, %v229
    %v380 = vadd.f32 %v338, %v230
    %v381 = vadd.f32 %v343, %v231
    %v382 = vadd.f32 %v348, %v232
    %v383 = vadd.f32 %v353, %v233
    %v384 = vadd.f32 %v358, %v234
    %385 = vset.pattern.permute.xlu0 1
    %386 = vperm.xlu0 %385, %v21
    %v387 = vpop.permute.xlu0 %386
    %389 = vset.pattern.permute.xlu0 1
    %390 = vperm.xlu0 %389, %v22
    %v391 = vpop.permute.xlu0 %390
    %393 = vset.pattern.permute.xlu0 1
    %394 = vperm.xlu0 %393, %v23
    %v395 = vpop.permute.xlu0 %394
    %397 = vset.pattern.permute.xlu0 1
    %398 = vperm.xlu0 %397, %v24
    %v399 = vpop.permute.xlu0 %398
    %401 = vset.pattern.permute.xlu0 1
    %402 = vperm.xlu0 %401, %v25
    %v403 = vpop.permute.xlu0 %402
    %405 = vset.pattern.permute.xlu0 1
    %406 = vperm.xlu0 %405, %v26
    %v407 = vpop.permute.xlu0 %406
    %409 = vset.pattern.permute.xlu0 1
    %410 = vperm.xlu0 %409, %v27
    %v411 = vpop.permute.xlu0 %410
    %413 = vset.pattern.permute.xlu0 1
    %414 = vperm.xlu0 %413, %v28
    %v415 = vpop.permute.xlu0 %414
    %417 = vset.pattern.permute.xlu0 1
    %418 = vperm.xlu0 %417, %v29
    %v419 = vpop.permute.xlu0 %418
    %421 = vset.pattern.permute.xlu0 1
    %422 = vperm.xlu0 %421, %v30
    %v423 = vpop.permute.xlu0 %422
    %425 = vset.pattern.permute.xlu0 1
    %426 = vperm.xlu0 %425, %v31
    %v427 = vpop.permute.xlu0 %426
    %429 = vset.pattern.permute.xlu0 1
    %430 = vperm.xlu0 %429, %v32
    %v431 = vpop.permute.xlu0 %430
    %433 = vset.pattern.permute.xlu0 1
    %434 = vperm.xlu0 %433, %v33
    %v435 = vpop.permute.xlu0 %434
    %437 = vset.pattern.permute.xlu0 1
    %438 = vperm.xlu0 %437, %v34
    %v439 = vpop.permute.xlu0 %438
    %441 = vset.pattern.permute.xlu0 1
    %442 = vperm.xlu0 %441, %v35
    %v443 = vpop.permute.xlu0 %442
    %445 = vset.pattern.permute.xlu0 1
    %446 = vperm.xlu0 %445, %v36
    %v447 = vpop.permute.xlu0 %446
    %449 = vset.pattern.permute.xlu0 1
    %450 = vperm.xlu0 %449, %v37
    %v451 = vpop.permute.xlu0 %450
    %453 = vset.pattern.permute.xlu0 1
    %454 = vperm.xlu0 %453, %v38
    %v455 = vpop.permute.xlu0 %454
    %457 = vset.pattern.permute.xlu0 1
    %458 = vperm.xlu0 %457, %v39
    %v459 = vpop.permute.xlu0 %458
    %461 = vset.pattern.permute.xlu0 1
    %462 = vperm.xlu0 %461, %v40
    %v463 = vpop.permute.xlu0 %462
    %465 = vset.pattern.permute.xlu0 1
    %466 = vperm.xlu0 %465, %v41
    %v467 = vpop.permute.xlu0 %466
    %469 = vset.pattern.permute.xlu0 1
    %470 = vperm.xlu0 %469, %v42
    %v471 = vpop.permute.xlu0 %470
    %473 = vset.pattern.permute.xlu0 1
    %474 = vperm.xlu0 %473, %v43
    %v475 = vpop.permute.xlu0 %474
    %477 = vset.pattern.permute.xlu0 1
    %478 = vperm.xlu0 %477, %v44
    %v479 = vpop.permute.xlu0 %478
    %481 = vset.pattern.permute.xlu0 1
    %482 = vperm.xlu0 %481, %v45
    %v483 = vpop.permute.xlu0 %482
    %v485 = vlaneseq
    %v486 = vshrl.u32 %v485, 7
    %v487 = vsub.s32 1, %v486
    %v488 = vrot.slane %v80, %v487
    %v489 = vmul.f32 %v387, %v488
    %v490 = vmul.f32 %v391, %v488
    %v491 = vmul.f32 %v395, %v488
    %v492 = vmul.f32 %v399, %v488
    %v493 = vmul.f32 %v403, %v488
    %v494 = vmul.f32 %v407, %v488
    %v495 = vmul.f32 %v411, %v488
    %v496 = vmul.f32 %v415, %v488
    %v497 = vmul.f32 %v419, %v488
    %v498 = vmul.f32 %v423, %v488
    %v499 = vmul.f32 %v427, %v488
    %v500 = vmul.f32 %v431, %v488
    %v501 = vmul.f32 %v435, %v488
    %v502 = vmul.f32 %v439, %v488
    %v503 = vmul.f32 %v443, %v488
    %v504 = vmul.f32 %v447, %v488
    %v505 = vmul.f32 %v451, %v488
    %v506 = vmul.f32 %v455, %v488
    %v507 = vmul.f32 %v459, %v488
    %v508 = vmul.f32 %v463, %v488
    %v509 = vmul.f32 %v467, %v488
    %v510 = vmul.f32 %v471, %v488
    %v511 = vmul.f32 %v475, %v488
    %v512 = vmul.f32 %v479, %v488
    %v513 = vmul.f32 %v483, %v488
    %v514 = vadd.f32 %v360, %v489
    %v515 = vadd.f32 %v361, %v490
    %v516 = vadd.f32 %v362, %v491
    %v517 = vadd.f32 %v363, %v492
    %v518 = vadd.f32 %v364, %v493
    %v519 = vadd.f32 %v365, %v494
    %v520 = vadd.f32 %v366, %v495
    %v521 = vadd.f32 %v367, %v496
    %v522 = vadd.f32 %v368, %v497
    %v523 = vadd.f32 %v369, %v498
    %v524 = vadd.f32 %v370, %v499
    %v525 = vadd.f32 %v371, %v500
    %v526 = vadd.f32 %v372, %v501
    %v527 = vadd.f32 %v373, %v502
    %v528 = vadd.f32 %v374, %v503
    %v529 = vadd.f32 %v375, %v504
    %v530 = vadd.f32 %v376, %v505
    %v531 = vadd.f32 %v377, %v506
    %v532 = vadd.f32 %v378, %v507
    %v533 = vadd.f32 %v379, %v508
    %v534 = vadd.f32 %v380, %v509
    %v535 = vadd.f32 %v381, %v510
    %v536 = vadd.f32 %v382, %v511
    %v537 = vadd.f32 %v383, %v512
    %v538 = vadd.f32 %v384, %v513
    %539 = vset.pattern.permute.xlu0 2
    %540 = vperm.xlu0 %539, %v21
    %v541 = vpop.permute.xlu0 %540
    %543 = vset.pattern.permute.xlu0 2
    %544 = vperm.xlu0 %543, %v22
    %v545 = vpop.permute.xlu0 %544
    %547 = vset.pattern.permute.xlu0 2
    %548 = vperm.xlu0 %547, %v23
    %v549 = vpop.permute.xlu0 %548
    %551 = vset.pattern.permute.xlu0 2
    %552 = vperm.xlu0 %551, %v24
    %v553 = vpop.permute.xlu0 %552
    %555 = vset.pattern.permute.xlu0 2
    %556 = vperm.xlu0 %555, %v25
    %v557 = vpop.permute.xlu0 %556
    %559 = vset.pattern.permute.xlu0 2
    %560 = vperm.xlu0 %559, %v26
    %v561 = vpop.permute.xlu0 %560
    %563 = vset.pattern.permute.xlu0 2
    %564 = vperm.xlu0 %563, %v27
    %v565 = vpop.permute.xlu0 %564
    %567 = vset.pattern.permute.xlu0 2
    %568 = vperm.xlu0 %567, %v28
    %v569 = vpop.permute.xlu0 %568
    %571 = vset.pattern.permute.xlu0 2
    %572 = vperm.xlu0 %571, %v29
    %v573 = vpop.permute.xlu0 %572
    %575 = vset.pattern.permute.xlu0 2
    %576 = vperm.xlu0 %575, %v30
    %v577 = vpop.permute.xlu0 %576
    %579 = vset.pattern.permute.xlu0 2
    %580 = vperm.xlu0 %579, %v31
    %v581 = vpop.permute.xlu0 %580
    %583 = vset.pattern.permute.xlu0 2
    %584 = vperm.xlu0 %583, %v32
    %v585 = vpop.permute.xlu0 %584
    %587 = vset.pattern.permute.xlu0 2
    %588 = vperm.xlu0 %587, %v33
    %v589 = vpop.permute.xlu0 %588
    %591 = vset.pattern.permute.xlu0 2
    %592 = vperm.xlu0 %591, %v34
    %v593 = vpop.permute.xlu0 %592
    %595 = vset.pattern.permute.xlu0 2
    %596 = vperm.xlu0 %595, %v35
    %v597 = vpop.permute.xlu0 %596
    %599 = vset.pattern.permute.xlu0 2
    %600 = vperm.xlu0 %599, %v36
    %v601 = vpop.permute.xlu0 %600
    %603 = vset.pattern.permute.xlu0 2
    %604 = vperm.xlu0 %603, %v37
    %v605 = vpop.permute.xlu0 %604
    %607 = vset.pattern.permute.xlu0 2
    %608 = vperm.xlu0 %607, %v38
    %v609 = vpop.permute.xlu0 %608
    %611 = vset.pattern.permute.xlu0 2
    %612 = vperm.xlu0 %611, %v39
    %v613 = vpop.permute.xlu0 %612
    %615 = vset.pattern.permute.xlu0 2
    %616 = vperm.xlu0 %615, %v40
    %v617 = vpop.permute.xlu0 %616
    %619 = vset.pattern.permute.xlu0 2
    %620 = vperm.xlu0 %619, %v41
    %v621 = vpop.permute.xlu0 %620
    %623 = vset.pattern.permute.xlu0 2
    %624 = vperm.xlu0 %623, %v42
    %v625 = vpop.permute.xlu0 %624
    %627 = vset.pattern.permute.xlu0 2
    %628 = vperm.xlu0 %627, %v43
    %v629 = vpop.permute.xlu0 %628
    %631 = vset.pattern.permute.xlu0 2
    %632 = vperm.xlu0 %631, %v44
    %v633 = vpop.permute.xlu0 %632
    %635 = vset.pattern.permute.xlu0 2
    %636 = vperm.xlu0 %635, %v45
    %v637 = vpop.permute.xlu0 %636
    %v639 = vlaneseq
    %v640 = vshrl.u32 %v639, 7
    %v641 = vsub.s32 2, %v640
    %v642 = vrot.slane %v80, %v641
    %v643 = vmul.f32 %v541, %v642
    %v644 = vmul.f32 %v545, %v642
    %v645 = vmul.f32 %v549, %v642
    %v646 = vmul.f32 %v553, %v642
    %v647 = vmul.f32 %v557, %v642
    %v648 = vmul.f32 %v561, %v642
    %v649 = vmul.f32 %v565, %v642
    %v650 = vmul.f32 %v569, %v642
    %v651 = vmul.f32 %v573, %v642
    %v652 = vmul.f32 %v577, %v642
    %v653 = vmul.f32 %v581, %v642
    %v654 = vmul.f32 %v585, %v642
    %v655 = vmul.f32 %v589, %v642
    %v656 = vmul.f32 %v593, %v642
    %v657 = vmul.f32 %v597, %v642
    %v658 = vmul.f32 %v601, %v642
    %v659 = vmul.f32 %v605, %v642
    %v660 = vmul.f32 %v609, %v642
    %v661 = vmul.f32 %v613, %v642
    %v662 = vmul.f32 %v617, %v642
    %v663 = vmul.f32 %v621, %v642
    %v664 = vmul.f32 %v625, %v642
    %v665 = vmul.f32 %v629, %v642
    %v666 = vmul.f32 %v633, %v642
    %v667 = vmul.f32 %v637, %v642
    %v668 = vadd.f32 %v514, %v643
    %v669 = vadd.f32 %v515, %v644
    %v670 = vadd.f32 %v516, %v645
    %v671 = vadd.f32 %v517, %v646
    %v672 = vadd.f32 %v518, %v647
    %v673 = vadd.f32 %v519, %v648
    %v674 = vadd.f32 %v520, %v649
    %v675 = vadd.f32 %v521, %v650
    %v676 = vadd.f32 %v522, %v651
    %v677 = vadd.f32 %v523, %v652
    %v678 = vadd.f32 %v524, %v653
    %v679 = vadd.f32 %v525, %v654
    %v680 = vadd.f32 %v526, %v655
    %v681 = vadd.f32 %v527, %v656
    %v682 = vadd.f32 %v528, %v657
    %v683 = vadd.f32 %v529, %v658
    %v684 = vadd.f32 %v530, %v659
    %v685 = vadd.f32 %v531, %v660
    %v686 = vadd.f32 %v532, %v661
    %v687 = vadd.f32 %v533, %v662
    %v688 = vadd.f32 %v534, %v663
    %v689 = vadd.f32 %v535, %v664
    %v690 = vadd.f32 %v536, %v665
    %v691 = vadd.f32 %v537, %v666
    %v692 = vadd.f32 %v538, %v667
    %693 = vset.pattern.permute.xlu0 3
    %694 = vperm.xlu0 %693, %v21
    %v695 = vpop.permute.xlu0 %694
    %697 = vset.pattern.permute.xlu0 3
    %698 = vperm.xlu0 %697, %v22
    %v699 = vpop.permute.xlu0 %698
    %701 = vset.pattern.permute.xlu0 3
    %702 = vperm.xlu0 %701, %v23
    %v703 = vpop.permute.xlu0 %702
    %705 = vset.pattern.permute.xlu0 3
    %706 = vperm.xlu0 %705, %v24
    %v707 = vpop.permute.xlu0 %706
    %709 = vset.pattern.permute.xlu0 3
    %710 = vperm.xlu0 %709, %v25
    %v711 = vpop.permute.xlu0 %710
    %713 = vset.pattern.permute.xlu0 3
    %714 = vperm.xlu0 %713, %v26
    %v715 = vpop.permute.xlu0 %714
    %717 = vset.pattern.permute.xlu0 3
    %718 = vperm.xlu0 %717, %v27
    %v719 = vpop.permute.xlu0 %718
    %721 = vset.pattern.permute.xlu0 3
    %722 = vperm.xlu0 %721, %v28
    %v723 = vpop.permute.xlu0 %722
    %725 = vset.pattern.permute.xlu0 3
    %726 = vperm.xlu0 %725, %v29
    %v727 = vpop.permute.xlu0 %726
    %729 = vset.pattern.permute.xlu0 3
    %730 = vperm.xlu0 %729, %v30
    %v731 = vpop.permute.xlu0 %730
    %733 = vset.pattern.permute.xlu0 3
    %734 = vperm.xlu0 %733, %v31
    %v735 = vpop.permute.xlu0 %734
    %737 = vset.pattern.permute.xlu0 3
    %738 = vperm.xlu0 %737, %v32
    %v739 = vpop.permute.xlu0 %738
    %741 = vset.pattern.permute.xlu0 3
    %742 = vperm.xlu0 %741, %v33
    %v743 = vpop.permute.xlu0 %742
    %745 = vset.pattern.permute.xlu0 3
    %746 = vperm.xlu0 %745, %v34
    %v747 = vpop.permute.xlu0 %746
    %749 = vset.pattern.permute.xlu0 3
    %750 = vperm.xlu0 %749, %v35
    %v751 = vpop.permute.xlu0 %750
    %753 = vset.pattern.permute.xlu0 3
    %754 = vperm.xlu0 %753, %v36
    %v755 = vpop.permute.xlu0 %754
    %757 = vset.pattern.permute.xlu0 3
    %758 = vperm.xlu0 %757, %v37
    %v759 = vpop.permute.xlu0 %758
    %761 = vset.pattern.permute.xlu0 3
    %762 = vperm.xlu0 %761, %v38
    %v763 = vpop.permute.xlu0 %762
    %765 = vset.pattern.permute.xlu0 3
    %766 = vperm.xlu0 %765, %v39
    %v767 = vpop.permute.xlu0 %766
    %769 = vset.pattern.permute.xlu0 3
    %770 = vperm.xlu0 %769, %v40
    %v771 = vpop.permute.xlu0 %770
    %773 = vset.pattern.permute.xlu0 3
    %774 = vperm.xlu0 %773, %v41
    %v775 = vpop.permute.xlu0 %774
    %777 = vset.pattern.permute.xlu0 3
    %778 = vperm.xlu0 %777, %v42
    %v779 = vpop.permute.xlu0 %778
    %781 = vset.pattern.permute.xlu0 3
    %782 = vperm.xlu0 %781, %v43
    %v783 = vpop.permute.xlu0 %782
    %785 = vset.pattern.permute.xlu0 3
    %786 = vperm.xlu0 %785, %v44
    %v787 = vpop.permute.xlu0 %786
    %789 = vset.pattern.permute.xlu0 3
    %790 = vperm.xlu0 %789, %v45
    %v791 = vpop.permute.xlu0 %790
    %v793 = vlaneseq
    %v794 = vshrl.u32 %v793, 7
    %v795 = vsub.s32 3, %v794
    %v796 = vrot.slane %v80, %v795
    %v797 = vmul.f32 %v695, %v796
    %v798 = vmul.f32 %v699, %v796
    %v799 = vmul.f32 %v703, %v796
    %v800 = vmul.f32 %v707, %v796
    %v801 = vmul.f32 %v711, %v796
    %v802 = vmul.f32 %v715, %v796
    %v803 = vmul.f32 %v719, %v796
    %v804 = vmul.f32 %v723, %v796
    %v805 = vmul.f32 %v727, %v796
    %v806 = vmul.f32 %v731, %v796
    %v807 = vmul.f32 %v735, %v796
    %v808 = vmul.f32 %v739, %v796
    %v809 = vmul.f32 %v743, %v796
    %v810 = vmul.f32 %v747, %v796
    %v811 = vmul.f32 %v751, %v796
    %v812 = vmul.f32 %v755, %v796
    %v813 = vmul.f32 %v759, %v796
    %v814 = vmul.f32 %v763, %v796
    %v815 = vmul.f32 %v767, %v796
    %v816 = vmul.f32 %v771, %v796
    %v817 = vmul.f32 %v775, %v796
    %v818 = vmul.f32 %v779, %v796
    %v819 = vmul.f32 %v783, %v796
    %v820 = vmul.f32 %v787, %v796
    %v821 = vmul.f32 %v791, %v796
    %v822 = vadd.f32 %v668, %v797
    %v823 = vadd.f32 %v669, %v798
    %v824 = vadd.f32 %v670, %v799
    %v825 = vadd.f32 %v671, %v800
    %v826 = vadd.f32 %v672, %v801
    %v827 = vadd.f32 %v673, %v802
    %v828 = vadd.f32 %v674, %v803
    %v829 = vadd.f32 %v675, %v804
    %v830 = vadd.f32 %v676, %v805
    %v831 = vadd.f32 %v677, %v806
    %v832 = vadd.f32 %v678, %v807
    %v833 = vadd.f32 %v679, %v808
    %v834 = vadd.f32 %v680, %v809
    %v835 = vadd.f32 %v681, %v810
    %v836 = vadd.f32 %v682, %v811
    %v837 = vadd.f32 %v683, %v812
    %v838 = vadd.f32 %v684, %v813
    %v839 = vadd.f32 %v685, %v814
    %v840 = vadd.f32 %v686, %v815
    %v841 = vadd.f32 %v687, %v816
    %v842 = vadd.f32 %v688, %v817
    %v843 = vadd.f32 %v689, %v818
    %v844 = vadd.f32 %v690, %v819
    %v845 = vadd.f32 %v691, %v820
    %v846 = vadd.f32 %v692, %v821
    %v847 = vmax.f32 %v822, 0.0
    %v848 = vmax.f32 %v823, 0.0
    %v849 = vmax.f32 %v824, 0.0
    %v850 = vmax.f32 %v825, 0.0
    %v851 = vmax.f32 %v826, 0.0
    %v852 = vmax.f32 %v827, 0.0
    %v853 = vmax.f32 %v828, 0.0
    %v854 = vmax.f32 %v829, 0.0
    %v855 = vmax.f32 %v830, 0.0
    %v856 = vmax.f32 %v831, 0.0
    %v857 = vmax.f32 %v832, 0.0
    %v858 = vmax.f32 %v833, 0.0
    %v859 = vmax.f32 %v834, 0.0
    %v860 = vmax.f32 %v835, 0.0
    %v861 = vmax.f32 %v836, 0.0
    %v862 = vmax.f32 %v837, 0.0
    %v863 = vmax.f32 %v838, 0.0
    %v864 = vmax.f32 %v839, 0.0
    %v865 = vmax.f32 %v840, 0.0
    %v866 = vmax.f32 %v841, 0.0
    %v867 = vmax.f32 %v842, 0.0
    %v868 = vmax.f32 %v843, 0.0
    %v869 = vmax.f32 %v844, 0.0
    %v870 = vmax.f32 %v845, 0.0
    %v871 = vmax.f32 %v846, 0.0
    %873 = vset.pattern.permute.xlu0 0
    %874 = vperm.xlu0 %873, %v77
    %v875 = vpop.permute.xlu0 %874
    %878 = vset.pattern.permute.xlu0 0
    %879 = vperm.xlu0 %878, %v78
    %v880 = vpop.permute.xlu0 %879
    %883 = vset.pattern.permute.xlu0 0
    %884 = vperm.xlu0 %883, %v79
    %v885 = vpop.permute.xlu0 %884
    %vm887 = vcmask 588800
    %v889 = vsel %vm887, %v72, 0
    %v892 = vsel %vm887, %v74, 0
    %v895 = vsel %vm887, %v76, 0
    %897 = vmatprep.subr.mxu0 0.0
    %898 = vmatpush1.msra.mxu0 %v847
    %899 = vmatprep.subr.mxu0 0.0
    %900 = vmatpush1.msra.mxu0 %v848
    %901 = vmatprep.subr.mxu0 0.0
    %902 = vmatpush1.msra.mxu0 %v849
    %903 = vmatprep.subr.mxu0 0.0
    %904 = vmatpush1.msra.mxu0 %v850
    %905 = vmatprep.subr.mxu0 0.0
    %906 = vmatpush1.msra.mxu0 %v851
    %907 = vmatprep.subr.mxu0 0.0
    %908 = vmatpush1.msra.mxu0 %v852
    %909 = vmatprep.subr.mxu0 0.0
    %910 = vmatpush1.msra.mxu0 %v853
    %911 = vmatprep.subr.mxu0 0.0
    %912 = vmatpush1.msra.mxu0 %v854
    %913 = vmatprep.subr.mxu0 0.0
    %914 = vmatpush1.msra.mxu0 %v855
    %915 = vmatprep.subr.mxu0 0.0
    %916 = vmatpush1.msra.mxu0 %v856
    %917 = vmatprep.subr.mxu0 0.0
    %918 = vmatpush1.msra.mxu0 %v857
    %919 = vmatprep.subr.mxu0 0.0
    %920 = vmatpush1.msra.mxu0 %v858
    %921 = vmatprep.subr.mxu0 0.0
    %922 = vmatpush1.msra.mxu0 %v859
    %923 = vmatprep.subr.mxu0 0.0
    %924 = vmatpush1.msra.mxu0 %v860
    %925 = vmatprep.subr.mxu0 0.0
    %926 = vmatpush1.msra.mxu0 %v861
    %927 = vmatprep.subr.mxu0 0.0
    %928 = vmatpush1.msra.mxu0 %v862
    %929 = vmatprep.subr.mxu0 0.0
    %930 = vmatpush1.msra.mxu0 %v863
    %931 = vmatprep.subr.mxu0 0.0
    %932 = vmatpush1.msra.mxu0 %v864
    %933 = vmatprep.subr.mxu0 0.0
    %934 = vmatpush1.msra.mxu0 %v865
    %935 = vmatprep.subr.mxu0 0.0
    %936 = vmatpush1.msra.mxu0 %v866
    %937 = vmatprep.subr.mxu0 0.0
    %938 = vmatpush1.msra.mxu0 %v867
    %939 = vmatprep.subr.mxu0 0.0
    %940 = vmatpush1.msra.mxu0 %v868
    %941 = vmatprep.subr.mxu0 0.0
    %942 = vmatpush1.msra.mxu0 %v869
    %943 = vmatprep.subr.mxu0 0.0
    %944 = vmatpush1.msra.mxu0 %v870
    %945 = vmatprep.subr.mxu0 0.0
    %946 = vmatpush1.msra.mxu0 %v871
    %947 = vmatprep.subr.mxu0 0.0
    %948 = vmatpush1.msra.mxu0 0.0
    %949 = vmatprep.subr.mxu0 0.0
    %950 = vmatpush1.msra.mxu0 0.0
    %951 = vmatprep.subr.mxu0 0.0
    %952 = vmatpush1.msra.mxu0 0.0
    %953 = vmatprep.subr.mxu0 0.0
    %954 = vmatpush1.msra.mxu0 0.0
    %955 = vmatprep.subr.mxu0 0.0
    %956 = vmatpush1.msra.mxu0 0.0
    %957 = vmatprep.subr.mxu0 0.0
    %958 = vmatpush1.msra.mxu0 0.0
    %959 = vmatprep.subr.mxu0 0.0
    %960 = vmatpush1.msra.mxu0 0.0
    %961 = vmatprep.mubr.f32.mxu0 %v889
    %962 = vmatmul.mubr.f32.gmra.mrb[0].mxu0 %v71
    %v963 = vpop.f32.mrb[0].mxu0
    %v964 = vadd.f32 %v875, %v963
    %v965 = vpop.f32.mrb[0].mxu0
    %966 = vmatprep.mubr.f32.mxu0 %v892
    %967 = vmatmul.mubr.f32.gmra.mrb[0].mxu0 %v73
    %v968 = vpop.f32.mrb[0].mxu0
    %v969 = vadd.f32 %v880, %v968
    %v970 = vpop.f32.mrb[0].mxu0
    %971 = vmatprep.mubr.f32.mxu0 %v895
    %972 = vmatmul.mubr.f32.gmra.mrb[0].mxu0 %v75
    %v973 = vpop.f32.mrb[0].mxu0
    %v974 = vadd.f32 %v885, %v973
    %v975 = vpop.f32.mrb[0].mxu0
    %976 = vdwg.mxu0
    %v977 = vmax.f32 %v964, 0.0
    %v978 = vmax.f32 %v969, 0.0
    %v979 = vmax.f32 %v974, 0.0
    %980 = vst [vmem:[#allocation2] sm:$0xff] %v977
    %981 = vst [vmem:[#allocation2 + $0x8] sm:$0xff] %v978
    %982 = vst [vmem:[#allocation2 + $0x10] sm:$0xf] %v979
    // Predicated region
    $region22: #{tpu_custom_call.1} parent=1 // pred_check
      _
    $region23: #{tpu_custom_call.1} parent=1 // pred_check_branch
      %984 = sbr.rel (0) target = $region25
    $region24: #{tpu_custom_call.1} parent=1 // pred_region
      %s986 = ssub.s32 384, 384
      %987 = vsyncadd [#allocation3], %s986
      %s988 = sshll.u32 [#allocation2], 4
      %s989 = int_to_ptr.vmem [resolvable:$true] %s988
      %994 = dma.vmem_to_hbm [thread:$0]  %s989, 384, %s5, [#allocation3], 128, 128, 8
    $region25: #{tpu_custom_call.1} parent=1 // pred_fallthru
      _
    // Predicated region
    $region26: #{tpu_custom_call.1} parent=1 // pred_check
      _
    $region27: #{tpu_custom_call.1} parent=1 // pred_check_branch
      %996 = sbr.rel (0) target = $region29
    $region28: #{tpu_custom_call.1} parent=1 // pred_region
      %997 = dma.done [#allocation3], 384
    $region29: #{tpu_custom_call.1} parent=1 // pred_fallthru
      _
    %998 = vsyncpa [#allocation3], 1

</llo_original>
